<compile_context>
chip_gen: v7x
topology: tpu7x:2x2x1
jax: 0.10.0
libtpu: 0.0.40
codegen_flags: <defaults>
</compile_context>

<pallas_src>
import functools

import jax
import jax.numpy as jnp
from jax.experimental import pallas as pl
from jax.experimental.pallas import tpu as pltpu

_EPS = 1e-12          # F.normalize default eps (clamps the L2 norm)
_EPS2 = _EPS * _EPS   # max(sqrt(s), eps) == sqrt(max(s, eps**2)), eps**2 = 1e-24 (representable in f32)


def _row_cosine(p, z):
    """Per-row cosine similarity via fused row reductions (no (B,D) divides)."""
    p = p.astype(jnp.float32)
    z = z.astype(jnp.float32)
    s_pz = jnp.sum(p * z, axis=1, keepdims=True)
    s_pp = jnp.sum(p * p, axis=1, keepdims=True)
    s_zz = jnp.sum(z * z, axis=1, keepdims=True)
    inv_p = jax.lax.rsqrt(jnp.maximum(s_pp, _EPS2))   # EUP work on (TB,1) only
    inv_z = jax.lax.rsqrt(jnp.maximum(s_zz, _EPS2))
    return s_pz * inv_p * inv_z


def _siamusic_loss_kernel(p1_ref, z2_ref, p2_ref, z1_ref, out_ref, acc_ref, *,
                          batch, block_rows):
    i = pl.program_id(0)

    @pl.when(i == 0)
    def _init():
        acc_ref[0] = jnp.float32(0.0)

    cos = (_row_cosine(p1_ref[...], z2_ref[...])
           + _row_cosine(p2_ref[...], z1_ref[...]))

    # Mask rows of a partial last tile (OOB rows may contain garbage / NaN).
    row = i * block_rows + jax.lax.broadcasted_iota(jnp.int32, (block_rows, 1), 0)
    cos = jnp.where(row < batch, cos, 0.0)

    acc_ref[0] += jnp.sum(cos)

    @pl.when(i == pl.num_programs(0) - 1)
    def _finalize():
        # L = -(mean(cos1) + mean(cos2)) / 2 = -sum(cos1 + cos2) / (2*B)
        out_ref[0, 0] = acc_ref[0] * jnp.float32(-0.5 / batch)


def _round_up(x, m):
    return (x + m - 1) // m * m


def _choose_block_rows(batch, feat, itemsize, vmem_budget_bytes=12 * 2**20):
    """Largest row tile s.t. 4 inputs x 2 pipeline buffers fit the VMEM budget.

    Budget is conservative so it is safe on v5e (16 MiB default scoped VMEM)
    and v7x (64 MiB physical VMEM) alike.
    """
    unit = max(8, 32 // max(itemsize, 1))   # 8 for f32, 16 for bf16, 32 for int8/fp8
    if batch <= unit:
        return batch                        # full-dim block is always legal
    per_row = 4 * 2 * feat * itemsize       # 4 inputs x 2 pipeline buffers
    tb = max(unit, min(512, vmem_budget_bytes // per_row))
    tb = (tb // unit) * unit
    return int(min(tb, _round_up(batch, unit)))


def siamusic_loss(p1, z2, p2, z1, *, block_rows=None):
    """Pallas implementation of SiamusicLoss.forward (feature axis = 1)."""
    assert p1.shape == z2.shape == p2.shape == z1.shape
    assert p1.ndim == 2
    B, D = p1.shape
    itemsize = jnp.dtype(p1.dtype).itemsize
    if block_rows is None:
        block_rows = _choose_block_rows(B, D, itemsize)
    grid = (pl.cdiv(B, block_rows),)

    in_spec = pl.BlockSpec((block_rows, D), lambda i: (i, 0))
    out_spec = pl.BlockSpec((1, 1), lambda i: (0, 0), memory_space=pltpu.SMEM)

    kernel = functools.partial(_siamusic_loss_kernel, batch=B, block_rows=block_rows)

    cost = pl.CostEstimate(
        flops=12 * B * D,                      # 3 row reductions (mul+add) x 2 pairs
        transcendentals=4 * B,                 # 2 rsqrt per pair x 2 pairs
        bytes_accessed=4 * B * D * itemsize + 4,
    )

    out = pl.pallas_call(
        kernel,
        out_shape=jax.ShapeDtypeStruct((1, 1), jnp.float32),
        grid=grid,
        in_specs=[in_spec, in_spec, in_spec, in_spec],
        out_specs=out_spec,
        scratch_shapes=[pltpu.SMEM((1,), jnp.float32)],
        compiler_params=pltpu.CompilerParams(
            dimension_semantics=("arbitrary",),   # accumulator carried across steps
            vmem_limit_bytes=32 * 2**20,
        ),
        cost_estimate=cost,
    )(p1, z2, p2, z1)
    return out[0, 0]


def siamusic_loss_ref(p1, z2, p2, z1):
    """Pure-JAX reference mirroring the PyTorch forward (normalize then dot)."""
    def neg_cos_sim(p, z):
        p = p.astype(jnp.float32)
        z = z.astype(jnp.float32)
        p_n = p / jnp.maximum(jnp.linalg.norm(p, axis=1, keepdims=True), _EPS)
        z_n = z / jnp.maximum(jnp.linalg.norm(z, axis=1, keepdims=True), _EPS)
        return -jnp.mean(jnp.sum(p_n * z_n, axis=1))
    return neg_cos_sim(p1, z2) / 2 + neg_cos_sim(p2, z1) / 2


if __name__ == "__main__":
    root = jax.random.PRNGKey(0)

    def make(seed, bs, d, dtype):
        ks = jax.random.split(jax.random.fold_in(root, seed), 4)
        return [jax.random.normal(k, (bs, d), dtype=dtype) for k in ks]

    # 1) small SimSiam-style projector/predictor outputs, f32
    p1, z2, p2, z1 = make(0, 64, 128, jnp.float32)
    out = jax.block_until_ready(siamusic_loss(p1, z2, p2, z1))
    ref = jax.block_until_ready(siamusic_loss_ref(p1, z2, p2, z1))
    assert jnp.allclose(out, ref, atol=1e-5, rtol=1e-5), (out, ref)

    # 2) batch not a multiple of the tile -> exercises the partial-tile mask
    p1, z2, p2, z1 = make(1, 50, 96, jnp.float32)
    out = jax.block_until_ready(siamusic_loss(p1, z2, p2, z1, block_rows=16))
    ref = jax.block_until_ready(siamusic_loss_ref(p1, z2, p2, z1))
    assert jnp.allclose(out, ref, atol=1e-5, rtol=1e-5), (out, ref)

    # 3) bf16 inputs: half the HBM bytes, arithmetic still f32 inside the kernel
    p1, z2, p2, z1 = make(2, 32, 128, jnp.bfloat16)
    out = jax.block_until_ready(siamusic_loss(p1, z2, p2, z1))
    ref = jax.block_until_ready(siamusic_loss_ref(p1, z2, p2, z1))
    assert jnp.allclose(out, ref, atol=1e-3, rtol=1e-3), (out, ref)

    print("KERNEL_OK")
</pallas_src>

<mosaic_0001>
module attributes {stable_mosaic.version = 11 : i64} {
  func.func @_siamusic_loss_kernel(%arg0: i32, %arg1: memref<64x128xf32, #tpu.memory_space<vmem>>, %arg2: memref<64x128xf32, #tpu.memory_space<vmem>>, %arg3: memref<64x128xf32, #tpu.memory_space<vmem>>, %arg4: memref<64x128xf32, #tpu.memory_space<vmem>>, %arg5: memref<1x1xf32, #tpu.memory_space<smem>>, %arg6: memref<1xf32, #tpu.memory_space<smem>>) attributes {dimension_semantics = [#tpu.dimension_semantics<arbitrary>], iteration_bounds = array<i64: 1>, scalar_prefetch = 0 : i64, scratch_operands = 1 : i64, tpu.core_type = #tpu.core_type<tc>, window_params = [{transform_indices = @transform_0, window_bounds = array<i64: 64, 128>}, {transform_indices = @transform_1, window_bounds = array<i64: 64, 128>}, {transform_indices = @transform_2, window_bounds = array<i64: 64, 128>}, {transform_indices = @transform_3, window_bounds = array<i64: 64, 128>}, {transform_indices = @transform_4, window_bounds = array<i64: 1, 1>}]} {
    %c0_i32 = arith.constant 0 : i32
    %0 = arith.cmpi eq, %arg0, %c0_i32 : i32
    %1 = arith.extui %0 : i1 to i32
    %c0_i32_0 = arith.constant 0 : i32
    %2 = arith.cmpi ne, %1, %c0_i32_0 : i32
    scf.if %2 {
      %cst_24 = arith.constant 0.000000e+00 : f32
      %c0_25 = arith.constant 0 : index
      %60 = memref.load %arg6[%c0_25] : memref<1xf32, #tpu.memory_space<smem>>
      memref.store %cst_24, %arg6[%c0_25] : memref<1xf32, #tpu.memory_space<smem>>
    } else {
    }
    %c0 = arith.constant 0 : index
    %c0_1 = arith.constant 0 : index
    %3 = vector.load %arg1[%c0, %c0_1] : memref<64x128xf32, #tpu.memory_space<vmem>>, vector<64x128xf32>
    %c0_2 = arith.constant 0 : index
    %c0_3 = arith.constant 0 : index
    %4 = vector.load %arg2[%c0_2, %c0_3] : memref<64x128xf32, #tpu.memory_space<vmem>>, vector<64x128xf32>
    %5 = arith.mulf %3, %4 : vector<64x128xf32>
    %cst = arith.constant dense<0.000000e+00> : vector<64xf32>
    %6 = vector.multi_reduction <add>, %5, %cst [1] : vector<64x128xf32> to vector<64xf32>
    %7 = vector.shape_cast %6 : vector<64xf32> to vector<64x1xf32>
    %8 = arith.mulf %3, %3 : vector<64x128xf32>
    %cst_4 = arith.constant dense<0.000000e+00> : vector<64xf32>
    %9 = vector.multi_reduction <add>, %8, %cst_4 [1] : vector<64x128xf32> to vector<64xf32>
    %10 = vector.shape_cast %9 : vector<64xf32> to vector<64x1xf32>
    %11 = arith.mulf %4, %4 : vector<64x128xf32>
    %cst_5 = arith.constant dense<0.000000e+00> : vector<64xf32>
    %12 = vector.multi_reduction <add>, %11, %cst_5 [1] : vector<64x128xf32> to vector<64xf32>
    %13 = vector.shape_cast %12 : vector<64xf32> to vector<64x1xf32>
    %cst_6 = arith.constant 1.000000e-24 : f32
    %14 = vector.broadcast %cst_6 : f32 to vector<64x1xf32>
    %15 = arith.maximumf %10, %14 : vector<64x1xf32>
    %16 = math.rsqrt %15 : vector<64x1xf32>
    %cst_7 = arith.constant 1.000000e-24 : f32
    %17 = vector.broadcast %cst_7 : f32 to vector<64x1xf32>
    %18 = arith.maximumf %13, %17 : vector<64x1xf32>
    %19 = math.rsqrt %18 : vector<64x1xf32>
    %20 = arith.mulf %7, %16 : vector<64x1xf32>
    %21 = arith.mulf %20, %19 : vector<64x1xf32>
    %c0_8 = arith.constant 0 : index
    %c0_9 = arith.constant 0 : index
    %22 = vector.load %arg3[%c0_8, %c0_9] : memref<64x128xf32, #tpu.memory_space<vmem>>, vector<64x128xf32>
    %c0_10 = arith.constant 0 : index
    %c0_11 = arith.constant 0 : index
    %23 = vector.load %arg4[%c0_10, %c0_11] : memref<64x128xf32, #tpu.memory_space<vmem>>, vector<64x128xf32>
    %24 = arith.mulf %22, %23 : vector<64x128xf32>
    %cst_12 = arith.constant dense<0.000000e+00> : vector<64xf32>
    %25 = vector.multi_reduction <add>, %24, %cst_12 [1] : vector<64x128xf32> to vector<64xf32>
    %26 = vector.shape_cast %25 : vector<64xf32> to vector<64x1xf32>
    %27 = arith.mulf %22, %22 : vector<64x128xf32>
    %cst_13 = arith.constant dense<0.000000e+00> : vector<64xf32>
    %28 = vector.multi_reduction <add>, %27, %cst_13 [1] : vector<64x128xf32> to vector<64xf32>
    %29 = vector.shape_cast %28 : vector<64xf32> to vector<64x1xf32>
    %30 = arith.mulf %23, %23 : vector<64x128xf32>
    %cst_14 = arith.constant dense<0.000000e+00> : vector<64xf32>
    %31 = vector.multi_reduction <add>, %30, %cst_14 [1] : vector<64x128xf32> to vector<64xf32>
    %32 = vector.shape_cast %31 : vector<64xf32> to vector<64x1xf32>
    %cst_15 = arith.constant 1.000000e-24 : f32
    %33 = vector.broadcast %cst_15 : f32 to vector<64x1xf32>
    %34 = arith.maximumf %29, %33 : vector<64x1xf32>
    %35 = math.rsqrt %34 : vector<64x1xf32>
    %cst_16 = arith.constant 1.000000e-24 : f32
    %36 = vector.broadcast %cst_16 : f32 to vector<64x1xf32>
    %37 = arith.maximumf %32, %36 : vector<64x1xf32>
    %38 = math.rsqrt %37 : vector<64x1xf32>
    %39 = arith.mulf %26, %35 : vector<64x1xf32>
    %40 = arith.mulf %39, %38 : vector<64x1xf32>
    %41 = arith.addf %21, %40 : vector<64x1xf32>
    %c64_i32 = arith.constant 64 : i32
    %42 = arith.muli %arg0, %c64_i32 : i32
    %43 = tpu.iota {dimensions = array<i32: 0>} : vector<64x1xi32>
    %44 = vector.broadcast %42 : i32 to vector<64x1xi32>
    %45 = arith.addi %44, %43 : vector<64x1xi32>
    %c64_i32_17 = arith.constant 64 : i32
    %46 = vector.broadcast %c64_i32_17 : i32 to vector<64x1xi32>
    %47 = arith.cmpi slt, %45, %46 : vector<64x1xi32>
    %cst_18 = arith.constant 0.000000e+00 : f32
    %48 = vector.broadcast %cst_18 : f32 to vector<64x1xf32>
    %49 = arith.select %47, %41, %48 : vector<64x1xi1>, vector<64x1xf32>
    %c0_19 = arith.constant 0 : index
    %50 = memref.load %arg6[%c0_19] : memref<1xf32, #tpu.memory_space<smem>>
    %51 = vector.shape_cast %49 : vector<64x1xf32> to vector<1x64x1xf32>
    %cst_20 = arith.constant dense<0.000000e+00> : vector<1xf32>
    %52 = vector.multi_reduction <add>, %51, %cst_20 [1, 2] : vector<1x64x1xf32> to vector<1xf32>
    %53 = vector.shape_cast %52 : vector<1xf32> to vector<1x1x1xf32>
    %54 = vector.extract %53[0, 0, 0] : f32 from vector<1x1x1xf32>
    %55 = arith.addf %50, %54 : f32
    %c0_21 = arith.constant 0 : index
    %56 = memref.load %arg6[%c0_21] : memref<1xf32, #tpu.memory_space<smem>>
    memref.store %55, %arg6[%c0_21] : memref<1xf32, #tpu.memory_space<smem>>
    %c0_i32_22 = arith.constant 0 : i32
    %57 = arith.cmpi eq, %arg0, %c0_i32_22 : i32
    %58 = arith.extui %57 : i1 to i32
    %c0_i32_23 = arith.constant 0 : i32
    %59 = arith.cmpi ne, %58, %c0_i32_23 : i32
    scf.if %59 {
      %c0_24 = arith.constant 0 : index
      %60 = memref.load %arg6[%c0_24] : memref<1xf32, #tpu.memory_space<smem>>
      %cst_25 = arith.constant -7.812500e-03 : f32
      %61 = arith.mulf %60, %cst_25 : f32
      %c0_26 = arith.constant 0 : index
      %c0_27 = arith.constant 0 : index
      %62 = memref.load %arg5[%c0_26, %c0_27] : memref<1x1xf32, #tpu.memory_space<smem>>
      memref.store %61, %arg5[%c0_26, %c0_27] : memref<1x1xf32, #tpu.memory_space<smem>>
    } else {
    }
    return
  }
  func.func @transform_0(%arg0: i32) -> (i32, i32) {
    %c0_i32 = arith.constant 0 : i32
    %c0_i32_0 = arith.constant 0 : i32
    return %arg0, %c0_i32 : i32, i32
  }
  func.func @transform_1(%arg0: i32) -> (i32, i32) {
    %c0_i32 = arith.constant 0 : i32
    %c0_i32_0 = arith.constant 0 : i32
    return %arg0, %c0_i32 : i32, i32
  }
  func.func @transform_2(%arg0: i32) -> (i32, i32) {
    %c0_i32 = arith.constant 0 : i32
    %c0_i32_0 = arith.constant 0 : i32
    return %arg0, %c0_i32 : i32, i32
  }
  func.func @transform_3(%arg0: i32) -> (i32, i32) {
    %c0_i32 = arith.constant 0 : i32
    %c0_i32_0 = arith.constant 0 : i32
    return %arg0, %c0_i32 : i32, i32
  }
  func.func @transform_4(%arg0: i32) -> (i32, i32) {
    %c0_i32 = arith.constant 0 : i32
    %c0_i32_0 = arith.constant 0 : i32
    %c0_i32_1 = arith.constant 0 : i32
    return %c0_i32, %c0_i32_0 : i32, i32
  }
}

</mosaic_0001>

<llo_original>
// kernel: tpu_custom_call.1
$region0: #{tpu_custom_call.1}
  #allocation0 [shape = 'u32[]', space=smem, size = 0x4, offset = 0x4, fixed_abs, tag = 'smem constant byte address 0x4 - core index']
  #allocation1 [shape = 'u32[144,128]{1,0:T(1,128)}', space=vmem, size = 0x12000, scoped, tag = 'internal scratch']
  #allocation2 [shape = 'f32[1]{0:T(128)}', space=smem, size = 0x200, scoped, tag = 'scratch operand']
  %s0 = inlined_call_operand.hbm [shape: f32[64,128], index: 0, kind: input, shape index: {}]
  %s1 = inlined_call_operand.hbm [shape: f32[64,128], index: 1, kind: input, shape index: {}]
  %s2 = inlined_call_operand.hbm [shape: f32[64,128], index: 2, kind: input, shape index: {}]
  %s3 = inlined_call_operand.hbm [shape: f32[64,128], index: 3, kind: input, shape index: {}]
  %s4 = inlined_call_operand.hbm [shape: f32[1,1], index: 4, kind: output, shape index: {}]
  %s5 = sld [smem:[#allocation0]]
  $region50: #{tpu_custom_call.1} parent=0
    _
  %s7 = ssub.s32 1, %s5
  %s8 = scalar_select 0, %s7, %s5
  $region1: #{tpu_custom_call.1} parent=0
    #allocation3 [shape = 'u8[32768]{0}', space=vmem, size = 0x8000, scoped, tag = 'input window, operand 0, single buffered']
    #allocation4 [shape = 's32[1]{0}', space=sflag, size = 0x4, scoped, tag = 'scoped memory for tpu_custom_call.1']
    #allocation5 [shape = 's32[1]{0}', space=sflag, size = 0x4, scoped, tag = 'scoped memory for tpu_custom_call.1']
    #allocation6 [shape = 'u8[32768]{0}', space=vmem, size = 0x8000, scoped, tag = 'input window, operand 1, single buffered']
    #allocation7 [shape = 's32[1]{0}', space=sflag, size = 0x4, scoped, tag = 'scoped memory for tpu_custom_call.1']
    #allocation8 [shape = 'u8[32768]{0}', space=vmem, size = 0x8000, scoped, tag = 'input window, operand 2, single buffered']
    #allocation9 [shape = 'u8[32768]{0}', space=vmem, size = 0x8000, scoped, tag = 'input window, operand 3, single buffered']
    #allocation10 [shape = 's32[1]{0}', space=sflag, size = 0x4, scoped, tag = 'scoped memory for tpu_custom_call.1']
    #allocation11 [shape = 'u8[512]{0}', space=smem, size = 0x200, scoped, tag = 'output window, operand 0, single buffered']
    %9 = vsyncpa [#allocation4], 0
    %10 = vsyncpa [#allocation7], 0
    %11 = vsyncpa [#allocation10], 0
    %12 = vsyncpa [#allocation5], 0
    // Predicated region
    $region2: #{tpu_custom_call.1} parent=1 // pred_check
      _
    $region3: #{tpu_custom_call.1} parent=1 // pred_check_branch
      %14 = sbr.rel (0) target = $region5
    $region4: #{tpu_custom_call.1} parent=1 // pred_region
      %s16 = ssub.s32 1024, 1024
      %17 = vsyncadd [#allocation4], %s16
      %s18 = sshll.u32 [#allocation3], 4
      %s19 = int_to_ptr.vmem [resolvable:$true] %s18
      %24 = dma.hbm_to_vmem [thread:$0]  %s0, 1024, %s19, [#allocation4], 128, 128, 8
    $region5: #{tpu_custom_call.1} parent=1 // pred_fallthru
      _
    // Predicated region
    $region6: #{tpu_custom_call.1} parent=1 // pred_check
      _
    $region7: #{tpu_custom_call.1} parent=1 // pred_check_branch
      %26 = sbr.rel (0) target = $region9
    $region8: #{tpu_custom_call.1} parent=1 // pred_region
      %s28 = ssub.s32 1024, 1024
      %29 = vsyncadd [#allocation7], %s28
      %s30 = sshll.u32 [#allocation6], 4
      %s31 = int_to_ptr.vmem [resolvable:$true] %s30
      %36 = dma.hbm_to_vmem [thread:$0]  %s1, 1024, %s31, [#allocation7], 128, 128, 8
    $region9: #{tpu_custom_call.1} parent=1 // pred_fallthru
      _
    // Predicated region
    $region10: #{tpu_custom_call.1} parent=1 // pred_check
      _
    $region11: #{tpu_custom_call.1} parent=1 // pred_check_branch
      %38 = sbr.rel (0) target = $region13
    $region12: #{tpu_custom_call.1} parent=1 // pred_region
      %s40 = ssub.s32 1024, 1024
      %41 = vsyncadd [#allocation7], %s40
      %s42 = sshll.u32 [#allocation8], 4
      %s43 = int_to_ptr.vmem [resolvable:$true] %s42
      %48 = dma.hbm_to_vmem [thread:$0]  %s2, 1024, %s43, [#allocation7], 128, 128, 8
    $region13: #{tpu_custom_call.1} parent=1 // pred_fallthru
      _
    // Predicated region
    $region14: #{tpu_custom_call.1} parent=1 // pred_check
      _
    $region15: #{tpu_custom_call.1} parent=1 // pred_check_branch
      %50 = sbr.rel (0) target = $region17
    $region16: #{tpu_custom_call.1} parent=1 // pred_region
      %s52 = ssub.s32 1024, 1024
      %53 = vsyncadd [#allocation10], %s52
      %s54 = sshll.u32 [#allocation9], 4
      %s55 = int_to_ptr.vmem [resolvable:$true] %s54
      %60 = dma.hbm_to_vmem [thread:$0]  %s3, 1024, %s55, [#allocation10], 128, 128, 8
    $region17: #{tpu_custom_call.1} parent=1 // pred_fallthru
      _
    // Predicated region
    $region18: #{tpu_custom_call.1} parent=1 // pred_check
      _
    $region19: #{tpu_custom_call.1} parent=1 // pred_check_branch
      %62 = sbr.rel (0) target = $region21
    $region20: #{tpu_custom_call.1} parent=1 // pred_region
      %63 = dma.done [#allocation4], 1024
    $region21: #{tpu_custom_call.1} parent=1 // pred_fallthru
      _
    // Predicated region
    $region22: #{tpu_custom_call.1} parent=1 // pred_check
      _
    $region23: #{tpu_custom_call.1} parent=1 // pred_check_branch
      %65 = sbr.rel (0) target = $region25
    $region24: #{tpu_custom_call.1} parent=1 // pred_region
      %66 = dma.done [#allocation7], 1024
    $region25: #{tpu_custom_call.1} parent=1 // pred_fallthru
      _
    // Predicated region
    $region26: #{tpu_custom_call.1} parent=1 // pred_check
      _
    $region27: #{tpu_custom_call.1} parent=1 // pred_check_branch
      %68 = sbr.rel (0) target = $region29
    $region28: #{tpu_custom_call.1} parent=1 // pred_region
      %69 = dma.done [#allocation7], 1024
    $region29: #{tpu_custom_call.1} parent=1 // pred_fallthru
      _
    // Predicated region
    $region30: #{tpu_custom_call.1} parent=1 // pred_check
      _
    $region31: #{tpu_custom_call.1} parent=1 // pred_check_branch
      %71 = sbr.rel (0) target = $region33
    $region32: #{tpu_custom_call.1} parent=1 // pred_region
      %72 = dma.done [#allocation10], 1024
    $region33: #{tpu_custom_call.1} parent=1 // pred_fallthru
      _
    %p73 = scmp.eq.s32.totalorder 0, 0
    // Predicated region
    $region34: #{tpu_custom_call.1} parent=1 // pred_check
      %p74 = pneg %p73
    $region35: #{tpu_custom_call.1} parent=1 // pred_check_branch
      %76 = sbr.rel (%p74) target = $region37
    $region36: #{tpu_custom_call.1} parent=1 // pred_region
      %s77 = scalar_lea.smem [#allocation2], 0
      %78 = sst [smem:[%s77]] 0.0
    $region37: #{tpu_custom_call.1} parent=1 // pred_fallthru
      _
    %v79 = vld [vmem:[#allocation3] sm:$0xff]
    %v80 = vld [vmem:[#allocation3 + $0x8] sm:$0xff]
    %v81 = vld [vmem:[#allocation3 + $0x10] sm:$0xff]
    %v82 = vld [vmem:[#allocation3 + $0x18] sm:$0xff]
    %v83 = vld [vmem:[#allocation3 + $0x20] sm:$0xff]
    %v84 = vld [vmem:[#allocation3 + $0x28] sm:$0xff]
    %v85 = vld [vmem:[#allocation3 + $0x30] sm:$0xff]
    %v86 = vld [vmem:[#allocation3 + $0x38] sm:$0xff]
    %v87 = vld [vmem:[#allocation6] sm:$0xff]
    %v88 = vld [vmem:[#allocation6 + $0x8] sm:$0xff]
    %v89 = vld [vmem:[#allocation6 + $0x10] sm:$0xff]
    %v90 = vld [vmem:[#allocation6 + $0x18] sm:$0xff]
    %v91 = vld [vmem:[#allocation6 + $0x20] sm:$0xff]
    %v92 = vld [vmem:[#allocation6 + $0x28] sm:$0xff]
    %v93 = vld [vmem:[#allocation6 + $0x30] sm:$0xff]
    %v94 = vld [vmem:[#allocation6 + $0x38] sm:$0xff]
    %v95 = vmul.f32 %v79, %v87
    %v96 = vmul.f32 %v80, %v88
    %v97 = vmul.f32 %v81, %v89
    %v98 = vmul.f32 %v82, %v90
    %v99 = vmul.f32 %v83, %v91
    %v100 = vmul.f32 %v84, %v92
    %v101 = vmul.f32 %v85, %v93
    %v102 = vmul.f32 %v86, %v94
    %103 = vadd.xlane.f32.xlu0 %v95
    %v104 = vpop.xlane.xlu0 %103
    %105 = vadd.xlane.f32.xlu0 %v96
    %v106 = vpop.xlane.xlu0 %105
    %107 = vadd.xlane.f32.xlu0 %v97
    %v108 = vpop.xlane.xlu0 %107
    %109 = vadd.xlane.f32.xlu0 %v98
    %v110 = vpop.xlane.xlu0 %109
    %111 = vadd.xlane.f32.xlu0 %v99
    %v112 = vpop.xlane.xlu0 %111
    %113 = vadd.xlane.f32.xlu0 %v100
    %v114 = vpop.xlane.xlu0 %113
    %115 = vadd.xlane.f32.xlu0 %v101
    %v116 = vpop.xlane.xlu0 %115
    %117 = vadd.xlane.f32.xlu0 %v102
    %v118 = vpop.xlane.xlu0 %117
    %v119 = vmul.f32 %v79, %v79
    %v120 = vmul.f32 %v80, %v80
    %v121 = vmul.f32 %v81, %v81
    %v122 = vmul.f32 %v82, %v82
    %v123 = vmul.f32 %v83, %v83
    %v124 = vmul.f32 %v84, %v84
    %v125 = vmul.f32 %v85, %v85
    %v126 = vmul.f32 %v86, %v86
    %127 = vadd.xlane.f32.xlu0 %v119
    %v128 = vpop.xlane.xlu0 %127
    %129 = vadd.xlane.f32.xlu0 %v120
    %v130 = vpop.xlane.xlu0 %129
    %131 = vadd.xlane.f32.xlu0 %v121
    %v132 = vpop.xlane.xlu0 %131
    %133 = vadd.xlane.f32.xlu0 %v122
    %v134 = vpop.xlane.xlu0 %133
    %135 = vadd.xlane.f32.xlu0 %v123
    %v136 = vpop.xlane.xlu0 %135
    %137 = vadd.xlane.f32.xlu0 %v124
    %v138 = vpop.xlane.xlu0 %137
    %139 = vadd.xlane.f32.xlu0 %v125
    %v140 = vpop.xlane.xlu0 %139
    %141 = vadd.xlane.f32.xlu0 %v126
    %v142 = vpop.xlane.xlu0 %141
    %v143 = vmul.f32 %v87, %v87
    %v144 = vmul.f32 %v88, %v88
    %v145 = vmul.f32 %v89, %v89
    %v146 = vmul.f32 %v90, %v90
    %v147 = vmul.f32 %v91, %v91
    %v148 = vmul.f32 %v92, %v92
    %v149 = vmul.f32 %v93, %v93
    %v150 = vmul.f32 %v94, %v94
    %151 = vadd.xlane.f32.xlu0 %v143
    %v152 = vpop.xlane.xlu0 %151
    %153 = vadd.xlane.f32.xlu0 %v144
    %v154 = vpop.xlane.xlu0 %153
    %155 = vadd.xlane.f32.xlu0 %v145
    %v156 = vpop.xlane.xlu0 %155
    %157 = vadd.xlane.f32.xlu0 %v146
    %v158 = vpop.xlane.xlu0 %157
    %159 = vadd.xlane.f32.xlu0 %v147
    %v160 = vpop.xlane.xlu0 %159
    %161 = vadd.xlane.f32.xlu0 %v148
    %v162 = vpop.xlane.xlu0 %161
    %163 = vadd.xlane.f32.xlu0 %v149
    %v164 = vpop.xlane.xlu0 %163
    %165 = vadd.xlane.f32.xlu0 %v150
    %v166 = vpop.xlane.xlu0 %165
    %v167 = vmax.f32 %v128, 1e-24
    %v168 = vmax.f32 %v130, 1e-24
    %v169 = vmax.f32 %v132, 1e-24
    %v170 = vmax.f32 %v134, 1e-24
    %v171 = vmax.f32 %v136, 1e-24
    %v172 = vmax.f32 %v138, 1e-24
    %v173 = vmax.f32 %v140, 1e-24
    %v174 = vmax.f32 %v142, 1e-24
    %v175 = vrsqrt.pop %v167
    %v176 = vrsqrt.pop %v168
    %v177 = vrsqrt.pop %v169
    %v178 = vrsqrt.pop %v170
    %v179 = vrsqrt.pop %v171
    %v180 = vrsqrt.pop %v172
    %v181 = vrsqrt.pop %v173
    %v182 = vrsqrt.pop %v174
    %v183 = vmax.f32 %v152, 1e-24
    %v184 = vmax.f32 %v154, 1e-24
    %v185 = vmax.f32 %v156, 1e-24
    %v186 = vmax.f32 %v158, 1e-24
    %v187 = vmax.f32 %v160, 1e-24
    %v188 = vmax.f32 %v162, 1e-24
    %v189 = vmax.f32 %v164, 1e-24
    %v190 = vmax.f32 %v166, 1e-24
    %v191 = vrsqrt.pop %v183
    %v192 = vrsqrt.pop %v184
    %v193 = vrsqrt.pop %v185
    %v194 = vrsqrt.pop %v186
    %v195 = vrsqrt.pop %v187
    %v196 = vrsqrt.pop %v188
    %v197 = vrsqrt.pop %v189
    %v198 = vrsqrt.pop %v190
    %v199 = vmul.f32 %v104, %v175
    %v200 = vmul.f32 %v106, %v176
    %v201 = vmul.f32 %v108, %v177
    %v202 = vmul.f32 %v110, %v178
    %v203 = vmul.f32 %v112, %v179
    %v204 = vmul.f32 %v114, %v180
    %v205 = vmul.f32 %v116, %v181
    %v206 = vmul.f32 %v118, %v182
    %v207 = vmul.f32 %v199, %v191
    %v208 = vmul.f32 %v200, %v192
    %v209 = vmul.f32 %v201, %v193
    %v210 = vmul.f32 %v202, %v194
    %v211 = vmul.f32 %v203, %v195
    %v212 = vmul.f32 %v204, %v196
    %v213 = vmul.f32 %v205, %v197
    %v214 = vmul.f32 %v206, %v198
    %v215 = vld [vmem:[#allocation8] sm:$0xff]
    %v216 = vld [vmem:[#allocation8 + $0x8] sm:$0xff]
    %v217 = vld [vmem:[#allocation8 + $0x10] sm:$0xff]
    %v218 = vld [vmem:[#allocation8 + $0x18] sm:$0xff]
    %v219 = vld [vmem:[#allocation8 + $0x20] sm:$0xff]
    %v220 = vld [vmem:[#allocation8 + $0x28] sm:$0xff]
    %v221 = vld [vmem:[#allocation8 + $0x30] sm:$0xff]
    %v222 = vld [vmem:[#allocation8 + $0x38] sm:$0xff]
    %v223 = vld [vmem:[#allocation9] sm:$0xff]
    %v224 = vld [vmem:[#allocation9 + $0x8] sm:$0xff]
    %v225 = vld [vmem:[#allocation9 + $0x10] sm:$0xff]
    %v226 = vld [vmem:[#allocation9 + $0x18] sm:$0xff]
    %v227 = vld [vmem:[#allocation9 + $0x20] sm:$0xff]
    %v228 = vld [vmem:[#allocation9 + $0x28] sm:$0xff]
    %v229 = vld [vmem:[#allocation9 + $0x30] sm:$0xff]
    %v230 = vld [vmem:[#allocation9 + $0x38] sm:$0xff]
    %v231 = vmul.f32 %v215, %v223
    %v232 = vmul.f32 %v216, %v224
    %v233 = vmul.f32 %v217, %v225
    %v234 = vmul.f32 %v218, %v226
    %v235 = vmul.f32 %v219, %v227
    %v236 = vmul.f32 %v220, %v228
    %v237 = vmul.f32 %v221, %v229
    %v238 = vmul.f32 %v222, %v230
    %239 = vadd.xlane.f32.xlu0 %v231
    %v240 = vpop.xlane.xlu0 %239
    %241 = vadd.xlane.f32.xlu0 %v232
    %v242 = vpop.xlane.xlu0 %241
    %243 = vadd.xlane.f32.xlu0 %v233
    %v244 = vpop.xlane.xlu0 %243
    %245 = vadd.xlane.f32.xlu0 %v234
    %v246 = vpop.xlane.xlu0 %245
    %247 = vadd.xlane.f32.xlu0 %v235
    %v248 = vpop.xlane.xlu0 %247
    %249 = vadd.xlane.f32.xlu0 %v236
    %v250 = vpop.xlane.xlu0 %249
    %251 = vadd.xlane.f32.xlu0 %v237
    %v252 = vpop.xlane.xlu0 %251
    %253 = vadd.xlane.f32.xlu0 %v238
    %v254 = vpop.xlane.xlu0 %253
    %v255 = vmul.f32 %v215, %v215
    %v256 = vmul.f32 %v216, %v216
    %v257 = vmul.f32 %v217, %v217
    %v258 = vmul.f32 %v218, %v218
    %v259 = vmul.f32 %v219, %v219
    %v260 = vmul.f32 %v220, %v220
    %v261 = vmul.f32 %v221, %v221
    %v262 = vmul.f32 %v222, %v222
    %263 = vadd.xlane.f32.xlu0 %v255
    %v264 = vpop.xlane.xlu0 %263
    %265 = vadd.xlane.f32.xlu0 %v256
    %v266 = vpop.xlane.xlu0 %265
    %267 = vadd.xlane.f32.xlu0 %v257
    %v268 = vpop.xlane.xlu0 %267
    %269 = vadd.xlane.f32.xlu0 %v258
    %v270 = vpop.xlane.xlu0 %269
    %271 = vadd.xlane.f32.xlu0 %v259
    %v272 = vpop.xlane.xlu0 %271
    %273 = vadd.xlane.f32.xlu0 %v260
    %v274 = vpop.xlane.xlu0 %273
    %275 = vadd.xlane.f32.xlu0 %v261
    %v276 = vpop.xlane.xlu0 %275
    %277 = vadd.xlane.f32.xlu0 %v262
    %v278 = vpop.xlane.xlu0 %277
    %v279 = vmul.f32 %v223, %v223
    %v280 = vmul.f32 %v224, %v224
    %v281 = vmul.f32 %v225, %v225
    %v282 = vmul.f32 %v226, %v226
    %v283 = vmul.f32 %v227, %v227
    %v284 = vmul.f32 %v228, %v228
    %v285 = vmul.f32 %v229, %v229
    %v286 = vmul.f32 %v230, %v230
    %287 = vadd.xlane.f32.xlu0 %v279
    %v288 = vpop.xlane.xlu0 %287
    %289 = vadd.xlane.f32.xlu0 %v280
    %v290 = vpop.xlane.xlu0 %289
    %291 = vadd.xlane.f32.xlu0 %v281
    %v292 = vpop.xlane.xlu0 %291
    %293 = vadd.xlane.f32.xlu0 %v282
    %v294 = vpop.xlane.xlu0 %293
    %295 = vadd.xlane.f32.xlu0 %v283
    %v296 = vpop.xlane.xlu0 %295
    %297 = vadd.xlane.f32.xlu0 %v284
    %v298 = vpop.xlane.xlu0 %297
    %299 = vadd.xlane.f32.xlu0 %v285
    %v300 = vpop.xlane.xlu0 %299
    %301 = vadd.xlane.f32.xlu0 %v286
    %v302 = vpop.xlane.xlu0 %301
    %v303 = vmax.f32 %v264, 1e-24
    %v304 = vmax.f32 %v266, 1e-24
    %v305 = vmax.f32 %v268, 1e-24
    %v306 = vmax.f32 %v270, 1e-24
    %v307 = vmax.f32 %v272, 1e-24
    %v308 = vmax.f32 %v274, 1e-24
    %v309 = vmax.f32 %v276, 1e-24
    %v310 = vmax.f32 %v278, 1e-24
    %v311 = vrsqrt.pop %v303
    %v312 = vrsqrt.pop %v304
    %v313 = vrsqrt.pop %v305
    %v314 = vrsqrt.pop %v306
    %v315 = vrsqrt.pop %v307
    %v316 = vrsqrt.pop %v308
    %v317 = vrsqrt.pop %v309
    %v318 = vrsqrt.pop %v310
    %v319 = vmax.f32 %v288, 1e-24
    %v320 = vmax.f32 %v290, 1e-24
    %v321 = vmax.f32 %v292, 1e-24
    %v322 = vmax.f32 %v294, 1e-24
    %v323 = vmax.f32 %v296, 1e-24
    %v324 = vmax.f32 %v298, 1e-24
    %v325 = vmax.f32 %v300, 1e-24
    %v326 = vmax.f32 %v302, 1e-24
    %v327 = vrsqrt.pop %v319
    %v328 = vrsqrt.pop %v320
    %v329 = vrsqrt.pop %v321
    %v330 = vrsqrt.pop %v322
    %v331 = vrsqrt.pop %v323
    %v332 = vrsqrt.pop %v324
    %v333 = vrsqrt.pop %v325
    %v334 = vrsqrt.pop %v326
    %v335 = vmul.f32 %v240, %v311
    %v336 = vmul.f32 %v242, %v312
    %v337 = vmul.f32 %v244, %v313
    %v338 = vmul.f32 %v246, %v314
    %v339 = vmul.f32 %v248, %v315
    %v340 = vmul.f32 %v250, %v316
    %v341 = vmul.f32 %v252, %v317
    %v342 = vmul.f32 %v254, %v318
    %v343 = vmul.f32 %v335, %v327
    %v344 = vmul.f32 %v336, %v328
    %v345 = vmul.f32 %v337, %v329
    %v346 = vmul.f32 %v338, %v330
    %v347 = vmul.f32 %v339, %v331
    %v348 = vmul.f32 %v340, %v332
    %v349 = vmul.f32 %v341, %v333
    %v350 = vmul.f32 %v342, %v334
    %v351 = vadd.f32 %v207, %v343
    %v352 = vadd.f32 %v208, %v344
    %v353 = vadd.f32 %v209, %v345
    %v354 = vadd.f32 %v210, %v346
    %v355 = vadd.f32 %v211, %v347
    %v356 = vadd.f32 %v212, %v348
    %v357 = vadd.f32 %v213, %v349
    %v358 = vadd.f32 %v214, %v350
    %s359 = smul.u32 0, 64
    %v360 = vlaneseq
    %v361 = vshrl.u32 %v360, 7
    %v362 = vadd.s32 %v361, 8
    %v363 = vadd.s32 %v361, 16
    %v364 = vadd.s32 %v361, 24
    %v365 = vadd.s32 %v361, 32
    %v366 = vadd.s32 %v361, 40
    %v367 = vadd.s32 %v361, 48
    %v368 = vadd.s32 %v361, 56
    %v369 = vstv %s359
    %v370 = vadd.s32 %v369, %v361
    %v371 = vadd.s32 %v369, %v362
    %v372 = vadd.s32 %v369, %v363
    %v373 = vadd.s32 %v369, %v364
    %v374 = vadd.s32 %v369, %v365
    %v375 = vadd.s32 %v369, %v366
    %v376 = vadd.s32 %v369, %v367
    %v377 = vadd.s32 %v369, %v368
    %vm378 = vcmp.lt.s32.totalorder %v370, 64
    %vm379 = vcmp.lt.s32.totalorder %v371, 64
    %vm380 = vcmp.lt.s32.totalorder %v372, 64
    %vm381 = vcmp.lt.s32.totalorder %v373, 64
    %vm382 = vcmp.lt.s32.totalorder %v374, 64
    %vm383 = vcmp.lt.s32.totalorder %v375, 64
    %vm384 = vcmp.lt.s32.totalorder %v376, 64
    %vm385 = vcmp.lt.s32.totalorder %v377, 64
    %v386 = vsel %vm378, %v351, 0.0
    %v387 = vsel %vm379, %v352, 0.0
    %v388 = vsel %vm380, %v353, 0.0
    %v389 = vsel %vm381, %v354, 0.0
    %v390 = vsel %vm382, %v355, 0.0
    %v391 = vsel %vm383, %v356, 0.0
    %v392 = vsel %vm384, %v357, 0.0
    %v393 = vsel %vm385, %v358, 0.0
    %s394 = sld [smem:[#allocation2]]
    %vm395 = vcmask 7168
    %v396 = vsel %vm395, %v386, 0.0
    %v397 = vsel %vm395, %v387, 0.0
    %v398 = vadd.f32 %v396, %v397
    %v399 = vsel %vm395, %v388, 0.0
    %v400 = vadd.f32 %v398, %v399
    %v401 = vsel %vm395, %v389, 0.0
    %v402 = vadd.f32 %v400, %v401
    %v403 = vsel %vm395, %v390, 0.0
    %v404 = vadd.f32 %v402, %v403
    %v405 = vsel %vm395, %v391, 0.0
    %v406 = vadd.f32 %v404, %v405
    %v407 = vsel %vm395, %v392, 0.0
    %v408 = vadd.f32 %v406, %v407
    %v409 = vsel %vm395, %v393, 0.0
    %v410 = vadd.f32 %v408, %v409
    %411 = vadd.xlane.f32.xlu0 %v410
    %v412 = vpop.xlane.xlu0 %411
    %v413 = vrot.slane %v412, 4
    %v414 = vadd.f32 %v412, %v413
    %v415 = vrot.slane %v414, 2
    %v416 = vadd.f32 %v414, %v415
    %v417 = vrot.slane %v416, 1
    %v418 = vadd.f32 %v416, %v417
    %s419 = vtos %v418
    %s420 = sadd.f32 %s394, %s419
    %s421 = scalar_lea.smem [#allocation2], 0
    %422 = sst [smem:[%s421]] %s420
    // Predicated region
    $region38: #{tpu_custom_call.1} parent=1 // pred_check
      %p423 = pneg %p73
    $region39: #{tpu_custom_call.1} parent=1 // pred_check_branch
      %425 = sbr.rel (%p423) target = $region41
    $region40: #{tpu_custom_call.1} parent=1 // pred_region
      %s426 = sld [smem:[#allocation2]]
      %s427 = smul.f32 %s426, -0.0078125
      %s428 = scalar_lea.smem [#allocation11], 0
      %429 = sst [smem:[%s428]] %s427
    $region41: #{tpu_custom_call.1} parent=1 // pred_fallthru
      _
    // Predicated region
    $region42: #{tpu_custom_call.1} parent=1 // pred_check
      _
    $region43: #{tpu_custom_call.1} parent=1 // pred_check_branch
      %431 = sbr.rel (0) target = $region45
    $region44: #{tpu_custom_call.1} parent=1 // pred_region
      %s433 = ssub.s32 16, 16
      %434 = vsyncadd [#allocation5], %s433
      %437 = dma.smem_to_hbm [#allocation11], 16, %s4, [#allocation5]
    $region45: #{tpu_custom_call.1} parent=1 // pred_fallthru
      _
    // Predicated region
    $region46: #{tpu_custom_call.1} parent=1 // pred_check
      _
    $region47: #{tpu_custom_call.1} parent=1 // pred_check_branch
      %439 = sbr.rel (0) target = $region49
    $region48: #{tpu_custom_call.1} parent=1 // pred_region
      %440 = dma.done [#allocation5], 16
    $region49: #{tpu_custom_call.1} parent=1 // pred_fallthru
      _
    %441 = sfence
    %442 = vsyncpa [#allocation4], 1
    %443 = vsyncpa [#allocation7], 1
    %444 = vsyncpa [#allocation10], 1
    %445 = vsyncpa [#allocation5], 1

</llo_original>
